<compile_context>
chip_gen: v5e
topology: v5e:2x2
jax: 0.10.0
libtpu: 0.0.40
codegen_flags: <defaults>
</compile_context>

<pallas_src>
import functools

import jax
import jax.numpy as jnp
from jax.experimental import pallas as pl
from jax.experimental.pallas import tpu as pltpu


def _gn_elu(y, mask, gnorm, gamma, beta, eps):
    """GroupNorm (biased var, PyTorch-style) + ELU on y: (C_out, P), all f32.

    mask:  (1, P) with 1.0 on valid spatial positions (None => padded positions
           are exact zeros, which contribute nothing to the sums).
    gnorm: (C_out, C_out) group-aggregation matrix: row c holds
           1/(group_size * valid_count) on the channels of c's group.
    gamma/beta: (C_out, 1).
    """
    ym = y if mask is None else y * mask
    # Lane-reduce first (per-channel spatial sums), group-pool second with a
    # (C_out, C_out) @ (C_out, 1) matmul -- no full-width intermediates.
    s = jnp.sum(ym, axis=1, keepdims=True)                       # (C_out, 1)
    s2 = jnp.sum(ym * y, axis=1, keepdims=True)                  # (C_out, 1)
    mean = jnp.dot(gnorm, s, preferred_element_type=jnp.float32)
    ex2 = jnp.dot(gnorm, s2, preferred_element_type=jnp.float32)
    var = jnp.maximum(ex2 - mean * mean, 0.0)                    # cancellation guard
    scale = gamma * jax.lax.rsqrt(var + eps)                     # (C_out, 1)
    shift = beta - mean * scale
    yn = y * scale + shift
    # ELU(alpha=1)
    return jnp.where(yn > 0, yn, jnp.exp(jnp.minimum(yn, 0.0)) - 1.0)


def _convblock_direct_kernel(xflat_ref, w_ref, gnorm_ref, gamma_ref, beta_ref,
                             mask_ref, out_ref, *, KH, KW, Wp, Pe, eps):
    # Stride-1 fast path: conv patches are formed in-kernel from the flattened
    # padded input (row length Wp); no im2col materialization in HBM.
    #   xflat_ref: (B_t, C_in, L)            bf16
    #   w_ref:     (C_out, KH*KW*C_in)       bf16 (K-folded weights)
    #   out_ref:   (B_t, C_out, Pe) f32, Pe = round_up(H_out*Wp, 128); pad
    #              columns are masked out of GN stats and sliced off outside.
    mask = mask_ref[...]
    gnorm = gnorm_ref[...]
    gamma = gamma_ref[...]
    beta = beta_ref[...]
    w = w_ref[...]                                   # resident across the loop
    B_t = out_ref.shape[0]
    for b in range(B_t):                             # static unroll (small B_t)
        taps = []
        for kh in range(KH):                         # static 3x3 unroll
            for kw in range(KW):
                off = kh * Wp + kw
                taps.append(xflat_ref[b, :, off:off + Pe])   # (C_in, Pe) bf16
        patches = jnp.concatenate(taps, axis=0)              # (KH*KW*C_in, Pe)
        y = jnp.dot(w, patches, preferred_element_type=jnp.float32)
        out = _gn_elu(y, mask, gnorm, gamma, beta, eps)
        out_ref[b] = out.astype(out_ref.dtype)       # single full-tile store


def _convblock_im2col_kernel(patches_ref, w_ref, gnorm_ref, gamma_ref,
                             beta_ref, out_ref, *, eps):
    # General-stride fallback: (C_out, K) @ (K, P_pad) -> lane-dense output.
    # Padded columns of the im2col tensor are exact zeros, so no mask is
    # needed for the GN statistics (gnorm already normalizes by the true P).
    y = jnp.dot(w_ref[...], patches_ref[0],
                preferred_element_type=jnp.float32)
    out = _gn_elu(y, None, gnorm_ref[...], gamma_ref[...], beta_ref[...], eps)
    out_ref[0] = out.astype(out_ref.dtype)


def _group_matrix(c_out, num_groups, valid_count):
    cg = c_out // num_groups
    gid = jnp.arange(c_out) // cg
    same = (gid[:, None] == gid[None, :]).astype(jnp.float32)
    return same / float(cg * valid_count)


def _pick_batch_tile(n, per_sample_bytes, budget=4 << 20, max_bt=8):
    bt = 1
    for d in range(2, min(n, max_bt) + 1):
        if n % d == 0 and d * per_sample_bytes <= budget:
            bt = d
    return bt


def _vmem_limit_bytes(resident_bytes):
    # v5e's default scoped VMEM is only 16 MiB; raise it explicitly from the
    # actual block bytes, capped below v7x's 64 MiB/TC physical VMEM.
    return int(min(64 << 20, max(32 << 20, 2 * resident_bytes + (8 << 20))))


def conv_block(x, w, gamma, beta, *, stride, padding, num_groups, eps=1e-5):
    """x: (N, C_in, H, W) NCHW, w: (C_out, C_in, KH, KW) OIHW -> (N, C_out, Ho, Wo)."""
    N, C_in, H, W = x.shape
    C_out, _, KH, KW = w.shape
    sh, sw = (stride, stride) if isinstance(stride, int) else stride
    ph, pw = (padding, padding) if isinstance(padding, int) else padding
    H_out = (H + 2 * ph - KH) // sh + 1
    W_out = (W + 2 * pw - KW) // sw + 1
    P = H_out * W_out
    assert C_out % num_groups == 0

    gnorm = _group_matrix(C_out, num_groups, P)              # (C_out, C_out) f32
    gamma2 = gamma.reshape(C_out, 1).astype(jnp.float32)
    beta2 = beta.reshape(C_out, 1).astype(jnp.float32)

    if sh == 1 and sw == 1:
        # ------- fast path: no im2col expansion, patches formed in-kernel -------
        Hp, Wp = H + 2 * ph, W + 2 * pw
        P_slab = H_out * Wp                                  # slab incl. pad cols
        Pe = ((P_slab + 127) // 128) * 128                   # 128-aligned lanes
        need = (KH - 1) * Wp + (KW - 1) + Pe                 # max in-kernel slice end
        rows_total = -(-need // Wp)                          # >= Hp by construction
        extra_rows = rows_total - Hp
        L = rows_total * Wp
        Kf = KH * KW * C_in

        # bf16 BEFORE padding; one fused pad (spatial pad + slack rows).
        xflat = jnp.pad(
            x.astype(jnp.bfloat16),
            ((0, 0), (0, 0), (ph, ph + extra_rows), (pw, pw)),
        ).reshape(N, C_in, L)
        # K-folded weights: [co, (kh*KW+kw)*C_in + ci] = w[co, ci, kh, kw].
        w2 = jnp.transpose(w, (0, 2, 3, 1)).reshape(C_out, Kf).astype(jnp.bfloat16)
        # Valid slab positions (drop wrap/pad columns and the 128-pad tail).
        idx = jnp.arange(Pe)
        mask = (((idx % Wp) < W_out) & (idx < P_slab)).astype(jnp.float32)
        mask = mask.reshape(1, Pe)

        per_sample = C_in * L * 2 + C_out * Pe * 4
        B_t = _pick_batch_tile(N, per_sample)
        resident = (B_t * per_sample + C_out * Kf * 2 + C_out * C_out * 4
                    + 2 * C_out * 4 + Pe * 4 + Kf * Pe * 2 + C_out * Pe * 4)
        params = pltpu.CompilerParams(
            dimension_semantics=("parallel",),
            vmem_limit_bytes=_vmem_limit_bytes(resident))

        kernel = functools.partial(_convblock_direct_kernel, KH=KH, KW=KW,
                                   Wp=Wp, Pe=Pe, eps=eps)
        cost = pl.CostEstimate(
            flops=2 * N * C_out * Pe * Kf + 4 * N * C_out * C_out,
            transcendentals=N * C_out * (Pe + 1),
            bytes_accessed=(2 * N * C_in * L + 2 * C_out * Kf
                            + 4 * N * C_out * Pe
                            + 4 * (C_out * C_out + 2 * C_out + Pe)))
        out = pl.pallas_call(
            kernel,
            out_shape=jax.ShapeDtypeStruct((N, C_out, Pe), jnp.float32),
            grid_spec=pltpu.PrefetchScalarGridSpec(
                num_scalar_prefetch=0,
                grid=(N // B_t,),
                in_specs=[
                    pl.BlockSpec((B_t, C_in, L), lambda n: (n, 0, 0)),
                    pl.BlockSpec((C_out, Kf), lambda n: (0, 0)),
                    pl.BlockSpec((C_out, C_out), lambda n: (0, 0)),
                    pl.BlockSpec((C_out, 1), lambda n: (0, 0)),
                    pl.BlockSpec((C_out, 1), lambda n: (0, 0)),
                    pl.BlockSpec((1, Pe), lambda n: (0, 0)),
                ],
                out_specs=pl.BlockSpec((B_t, C_out, Pe), lambda n: (n, 0, 0)),
            ),
            compiler_params=params,
            cost_estimate=cost,
        )(xflat, w2, gnorm, gamma2, beta2, mask)
        # Drop the 128-pad tail and the wrap/pad columns; no transpose needed.
        # TODO(synk): this strided slice is an extra HBM copy; return the padded
        #             (Wp) layout if the consumer can accept it.
        out = out[:, :, :P_slab].reshape(N, C_out, H_out, Wp)
        return out[:, :, :, :W_out]

    # ------- general-stride fallback: wrapper im2col in (K, P) order -------
    K = C_in * KH * KW
    P_pad = ((P + 127) // 128) * 128
    xp = jnp.pad(x.astype(jnp.bfloat16),
                 ((0, 0), (0, 0), (ph, ph), (pw, pw)))
    taps = []
    for kh in range(KH):
        for kw in range(KW):
            taps.append(xp[:, :, kh:kh + sh * (H_out - 1) + 1:sh,
                               kw:kw + sw * (W_out - 1) + 1:sw])
    patches = jnp.stack(taps, axis=2).reshape(N, K, P)
    patches = jnp.pad(patches, ((0, 0), (0, 0), (0, P_pad - P)))  # zero cols
    w2 = w.reshape(C_out, K).astype(jnp.bfloat16)

    resident = (K * P_pad * 2 + C_out * K * 2 + C_out * C_out * 4
                + 2 * C_out * 4 + 2 * C_out * P_pad * 4)
    params = pltpu.CompilerParams(
        dimension_semantics=("parallel",),
        vmem_limit_bytes=_vmem_limit_bytes(resident))

    kernel = functools.partial(_convblock_im2col_kernel, eps=eps)
    cost = pl.CostEstimate(
        flops=2 * N * C_out * P_pad * K,
        transcendentals=N * C_out * (P_pad + 1),
        bytes_accessed=(2 * N * K * P_pad + 2 * C_out * K + 4 * N * C_out * P_pad
                        + 4 * (C_out * C_out + 2 * C_out)))
    out = pl.pallas_call(
        kernel,
        out_shape=jax.ShapeDtypeStruct((N, C_out, P_pad), jnp.float32),
        grid_spec=pltpu.PrefetchScalarGridSpec(
            num_scalar_prefetch=0,
            grid=(N,),
            in_specs=[
                pl.BlockSpec((1, K, P_pad), lambda n: (n, 0, 0)),
                pl.BlockSpec((C_out, K), lambda n: (0, 0)),
                pl.BlockSpec((C_out, C_out), lambda n: (0, 0)),
                pl.BlockSpec((C_out, 1), lambda n: (0, 0)),
                pl.BlockSpec((C_out, 1), lambda n: (0, 0)),
            ],
            out_specs=pl.BlockSpec((1, C_out, P_pad), lambda n: (n, 0, 0)),
        ),
        compiler_params=params,
        cost_estimate=cost,
    )(patches, w2, gnorm, gamma2, beta2)
    return out[:, :, :P].reshape(N, C_out, H_out, W_out)


def reference(x, w, gamma, beta, *, stride, padding, num_groups, eps=1e-5):
    sh, sw = (stride, stride) if isinstance(stride, int) else stride
    ph, pw = (padding, padding) if isinstance(padding, int) else padding
    y = jax.lax.conv_general_dilated(
        x, w, (sh, sw), [(ph, ph), (pw, pw)],
        dimension_numbers=("NCHW", "OIHW", "NCHW"))
    N, C, Ho, Wo = y.shape
    yg = y.reshape(N, num_groups, -1)
    m = yg.mean(-1, keepdims=True)
    v = ((yg - m) ** 2).mean(-1, keepdims=True)
    yn = ((yg - m) / jnp.sqrt(v + eps)).reshape(N, C, Ho, Wo)
    yn = yn * gamma[None, :, None, None] + beta[None, :, None, None]
    return jnp.where(yn > 0, yn, jnp.exp(yn) - 1.0)


if __name__ == "__main__":
    # Shapes consistent with ConvBlock(in=4, out=8, kernel=3): batch=2, 16x16.
    N, C_in, H, W = 2, 4, 16, 16
    C_out, KH, KW = 8, 3, 3
    num_groups = min(32, max(1, C_out // 4))        # = 2, as in the module

    key = jax.random.PRNGKey(0)
    kx, kw_, kg, kb = jax.random.split(key, 4)
    x = jax.random.normal(kx, (N, C_in, H, W), dtype=jnp.float32)
    w = jax.random.normal(kw_, (C_out, C_in, KH, KW), dtype=jnp.float32) * 0.1
    gamma = 1.0 + 0.1 * jax.random.normal(kg, (C_out,), dtype=jnp.float32)
    beta = 0.1 * jax.random.normal(kb, (C_out,), dtype=jnp.float32)

    # The kernel feeds the MXU bf16 inputs (f32 accumulation): validate tightly
    # against a reference with identically bf16-quantized conv inputs, plus a
    # loose sanity check against the pure-f32 reference.
    xq = x.astype(jnp.bfloat16).astype(jnp.float32)
    wq = w.astype(jnp.bfloat16).astype(jnp.float32)

    for stride, padding in [(1, 1), (2, 1)]:        # fast path + general fallback
        out = conv_block(x, w, gamma, beta, stride=stride, padding=padding,
                         num_groups=num_groups)
        out = jax.block_until_ready(out)
        Ho = (H + 2 * padding - KH) // stride + 1
        Wo = (W + 2 * padding - KW) // stride + 1
        assert out.shape == (N, C_out, Ho, Wo), out.shape

        ref_q = reference(xq, wq, gamma, beta, stride=stride, padding=padding,
                          num_groups=num_groups)
        err_q = float(jnp.max(jnp.abs(out - ref_q)))
        assert err_q < 2e-4, ("mismatch vs bf16-quantized reference", stride, err_q)

        ref_f = reference(x, w, gamma, beta, stride=stride, padding=padding,
                          num_groups=num_groups)
        err_f = float(jnp.max(jnp.abs(out - ref_f)))
        assert err_f < 1e-1, ("mismatch vs f32 reference", stride, err_f)

    print("KERNEL_OK")
</pallas_src>

<mosaic_0001>
module attributes {stable_mosaic.version = 11 : i64} {
  func.func @_convblock_direct_kernel(%arg0: i32, %arg1: memref<2x4x432xbf16, #tpu.memory_space<vmem>>, %arg2: memref<8x36xbf16, #tpu.memory_space<vmem>>, %arg3: memref<8x8xf32, #tpu.memory_space<vmem>>, %arg4: memref<8x1xf32, #tpu.memory_space<vmem>>, %arg5: memref<8x1xf32, #tpu.memory_space<vmem>>, %arg6: memref<1x384xf32, #tpu.memory_space<vmem>>, %arg7: memref<2x8x384xf32, #tpu.memory_space<vmem>>) attributes {dimension_semantics = [#tpu.dimension_semantics<parallel>], iteration_bounds = array<i64: 1>, scalar_prefetch = 0 : i64, scratch_operands = 0 : i64, tpu.core_type = #tpu.core_type<tc>, window_params = [{transform_indices = @transform_0, window_bounds = array<i64: 2, 4, 432>}, {pipeline_mode = #tpu.pipeline_mode<synchronous>, transform_indices = @transform_1, window_bounds = array<i64: 8, 36>}, {pipeline_mode = #tpu.pipeline_mode<synchronous>, transform_indices = @transform_2, window_bounds = array<i64: 8, 8>}, {pipeline_mode = #tpu.pipeline_mode<synchronous>, transform_indices = @transform_3, window_bounds = array<i64: 8, 1>}, {pipeline_mode = #tpu.pipeline_mode<synchronous>, transform_indices = @transform_4, window_bounds = array<i64: 8, 1>}, {pipeline_mode = #tpu.pipeline_mode<synchronous>, transform_indices = @transform_5, window_bounds = array<i64: 1, 384>}, {transform_indices = @transform_6, window_bounds = array<i64: 2, 8, 384>}]} {
    %c0 = arith.constant 0 : index
    %c0_0 = arith.constant 0 : index
    %0 = vector.load %arg6[%c0, %c0_0] : memref<1x384xf32, #tpu.memory_space<vmem>>, vector<1x384xf32>
    %c0_1 = arith.constant 0 : index
    %c0_2 = arith.constant 0 : index
    %1 = vector.load %arg3[%c0_1, %c0_2] : memref<8x8xf32, #tpu.memory_space<vmem>>, vector<8x8xf32>
    %c0_3 = arith.constant 0 : index
    %c0_4 = arith.constant 0 : index
    %2 = vector.load %arg4[%c0_3, %c0_4] : memref<8x1xf32, #tpu.memory_space<vmem>>, vector<8x1xf32>
    %c0_5 = arith.constant 0 : index
    %c0_6 = arith.constant 0 : index
    %3 = vector.load %arg5[%c0_5, %c0_6] : memref<8x1xf32, #tpu.memory_space<vmem>>, vector<8x1xf32>
    %c0_7 = arith.constant 0 : index
    %c0_8 = arith.constant 0 : index
    %4 = vector.load %arg2[%c0_7, %c0_8] : memref<8x36xbf16, #tpu.memory_space<vmem>>, vector<8x36xbf16>
    %c0_9 = arith.constant 0 : index
    %c0_10 = arith.constant 0 : index
    %c0_11 = arith.constant 0 : index
    %5 = vector.load %arg1[%c0_9, %c0_10, %c0_11] : memref<2x4x432xbf16, #tpu.memory_space<vmem>>, vector<1x4x384xbf16>
    %6 = vector.shape_cast %5 : vector<1x4x384xbf16> to vector<4x384xbf16>
    %c0_12 = arith.constant 0 : index
    %c0_13 = arith.constant 0 : index
    %c1 = arith.constant 1 : index
    %7 = vector.load %arg1[%c0_12, %c0_13, %c1] : memref<2x4x432xbf16, #tpu.memory_space<vmem>>, vector<1x4x384xbf16>
    %8 = vector.shape_cast %7 : vector<1x4x384xbf16> to vector<4x384xbf16>
    %c0_14 = arith.constant 0 : index
    %c0_15 = arith.constant 0 : index
    %c2 = arith.constant 2 : index
    %9 = vector.load %arg1[%c0_14, %c0_15, %c2] : memref<2x4x432xbf16, #tpu.memory_space<vmem>>, vector<1x4x384xbf16>
    %10 = vector.shape_cast %9 : vector<1x4x384xbf16> to vector<4x384xbf16>
    %c0_16 = arith.constant 0 : index
    %c0_17 = arith.constant 0 : index
    %c18 = arith.constant 18 : index
    %11 = vector.load %arg1[%c0_16, %c0_17, %c18] : memref<2x4x432xbf16, #tpu.memory_space<vmem>>, vector<1x4x384xbf16>
    %12 = vector.shape_cast %11 : vector<1x4x384xbf16> to vector<4x384xbf16>
    %c0_18 = arith.constant 0 : index
    %c0_19 = arith.constant 0 : index
    %c19 = arith.constant 19 : index
    %13 = vector.load %arg1[%c0_18, %c0_19, %c19] : memref<2x4x432xbf16, #tpu.memory_space<vmem>>, vector<1x4x384xbf16>
    %14 = vector.shape_cast %13 : vector<1x4x384xbf16> to vector<4x384xbf16>
    %c0_20 = arith.constant 0 : index
    %c0_21 = arith.constant 0 : index
    %c20 = arith.constant 20 : index
    %15 = vector.load %arg1[%c0_20, %c0_21, %c20] : memref<2x4x432xbf16, #tpu.memory_space<vmem>>, vector<1x4x384xbf16>
    %16 = vector.shape_cast %15 : vector<1x4x384xbf16> to vector<4x384xbf16>
    %c0_22 = arith.constant 0 : index
    %c0_23 = arith.constant 0 : index
    %c36 = arith.constant 36 : index
    %17 = vector.load %arg1[%c0_22, %c0_23, %c36] : memref<2x4x432xbf16, #tpu.memory_space<vmem>>, vector<1x4x384xbf16>
    %18 = vector.shape_cast %17 : vector<1x4x384xbf16> to vector<4x384xbf16>
    %c0_24 = arith.constant 0 : index
    %c0_25 = arith.constant 0 : index
    %c37 = arith.constant 37 : index
    %19 = vector.load %arg1[%c0_24, %c0_25, %c37] : memref<2x4x432xbf16, #tpu.memory_space<vmem>>, vector<1x4x384xbf16>
    %20 = vector.shape_cast %19 : vector<1x4x384xbf16> to vector<4x384xbf16>
    %c0_26 = arith.constant 0 : index
    %c0_27 = arith.constant 0 : index
    %c38 = arith.constant 38 : index
    %21 = vector.load %arg1[%c0_26, %c0_27, %c38] : memref<2x4x432xbf16, #tpu.memory_space<vmem>>, vector<1x4x384xbf16>
    %22 = vector.shape_cast %21 : vector<1x4x384xbf16> to vector<4x384xbf16>
    %23 = tpu.concatenate %6, %8, %10, %12, %14, %16, %18, %20, %22 in 0 : vector<4x384xbf16>, vector<4x384xbf16>, vector<4x384xbf16>, vector<4x384xbf16>, vector<4x384xbf16>, vector<4x384xbf16>, vector<4x384xbf16>, vector<4x384xbf16>, vector<4x384xbf16> -> vector<36x384xbf16>
    %cst = arith.constant dense<0.000000e+00> : vector<8x384xf32>
    %24 = tpu.matmul %4, %23, %cst {dimension_numbers = #tpu.dot_dimension_numbers<[1], [0], [0], [1], [0, 0, 1, 1], [], []>} : vector<8x36xbf16>, vector<36x384xbf16>, vector<8x384xf32> -> vector<8x384xf32>
    %25 = vector.broadcast %0 : vector<1x384xf32> to vector<8x384xf32>
    %26 = arith.mulf %24, %25 : vector<8x384xf32>
    %cst_28 = arith.constant dense<0.000000e+00> : vector<8xf32>
    %27 = vector.multi_reduction <add>, %26, %cst_28 [1] : vector<8x384xf32> to vector<8xf32>
    %28 = vector.shape_cast %27 : vector<8xf32> to vector<8x1xf32>
    %29 = arith.mulf %26, %24 : vector<8x384xf32>
    %cst_29 = arith.constant dense<0.000000e+00> : vector<8xf32>
    %30 = vector.multi_reduction <add>, %29, %cst_29 [1] : vector<8x384xf32> to vector<8xf32>
    %31 = vector.shape_cast %30 : vector<8xf32> to vector<8x1xf32>
    %cst_30 = arith.constant dense<0.000000e+00> : vector<8x1xf32>
    %32 = tpu.matmul %1, %28, %cst_30 {dimension_numbers = #tpu.dot_dimension_numbers<[1], [0], [0], [1], [0, 0, 1, 1], [], []>} : vector<8x8xf32>, vector<8x1xf32>, vector<8x1xf32> -> vector<8x1xf32>
    %cst_31 = arith.constant dense<0.000000e+00> : vector<8x1xf32>
    %33 = tpu.matmul %1, %31, %cst_31 {dimension_numbers = #tpu.dot_dimension_numbers<[1], [0], [0], [1], [0, 0, 1, 1], [], []>} : vector<8x8xf32>, vector<8x1xf32>, vector<8x1xf32> -> vector<8x1xf32>
    %34 = arith.mulf %32, %32 : vector<8x1xf32>
    %35 = arith.subf %33, %34 : vector<8x1xf32>
    %cst_32 = arith.constant 0.000000e+00 : f32
    %36 = vector.broadcast %cst_32 : f32 to vector<8x1xf32>
    %37 = arith.maximumf %35, %36 : vector<8x1xf32>
    %cst_33 = arith.constant 9.99999974E-6 : f32
    %38 = vector.broadcast %cst_33 : f32 to vector<8x1xf32>
    %39 = arith.addf %37, %38 : vector<8x1xf32>
    %40 = math.rsqrt %39 : vector<8x1xf32>
    %41 = arith.mulf %2, %40 : vector<8x1xf32>
    %42 = arith.mulf %32, %41 : vector<8x1xf32>
    %43 = arith.subf %3, %42 : vector<8x1xf32>
    %44 = vector.broadcast %41 : vector<8x1xf32> to vector<8x384xf32>
    %45 = arith.mulf %24, %44 : vector<8x384xf32>
    %46 = vector.broadcast %43 : vector<8x1xf32> to vector<8x384xf32>
    %47 = arith.addf %45, %46 : vector<8x384xf32>
    %cst_34 = arith.constant 0.000000e+00 : f32
    %48 = vector.broadcast %cst_34 : f32 to vector<8x384xf32>
    %49 = arith.cmpf ogt, %47, %48 : vector<8x384xf32>
    %cst_35 = arith.constant 0.000000e+00 : f32
    %50 = vector.broadcast %cst_35 : f32 to vector<8x384xf32>
    %51 = arith.minimumf %47, %50 : vector<8x384xf32>
    %52 = math.exp %51 : vector<8x384xf32>
    %cst_36 = arith.constant 1.000000e+00 : f32
    %53 = vector.broadcast %cst_36 : f32 to vector<8x384xf32>
    %54 = arith.subf %52, %53 : vector<8x384xf32>
    %55 = arith.select %49, %47, %54 : vector<8x384xi1>, vector<8x384xf32>
    %c0_37 = arith.constant 0 : index
    %c0_38 = arith.constant 0 : index
    %c0_39 = arith.constant 0 : index
    %56 = vector.load %arg7[%c0_37, %c0_38, %c0_39] : memref<2x8x384xf32, #tpu.memory_space<vmem>>, vector<1x8x384xf32>
    %57 = vector.shape_cast %56 : vector<1x8x384xf32> to vector<8x384xf32>
    %58 = vector.shape_cast %55 : vector<8x384xf32> to vector<1x8x384xf32>
    tpu.vector_store %arg7[%c0_37, %c0_38, %c0_39], %58 {strides = array<i32>} : memref<2x8x384xf32, #tpu.memory_space<vmem>>, vector<1x8x384xf32>,
    %c1_40 = arith.constant 1 : index
    %c0_41 = arith.constant 0 : index
    %c0_42 = arith.constant 0 : index
    %59 = vector.load %arg1[%c1_40, %c0_41, %c0_42] : memref<2x4x432xbf16, #tpu.memory_space<vmem>>, vector<1x4x384xbf16>
    %60 = vector.shape_cast %59 : vector<1x4x384xbf16> to vector<4x384xbf16>
    %c1_43 = arith.constant 1 : index
    %c0_44 = arith.constant 0 : index
    %c1_45 = arith.constant 1 : index
    %61 = vector.load %arg1[%c1_43, %c0_44, %c1_45] : memref<2x4x432xbf16, #tpu.memory_space<vmem>>, vector<1x4x384xbf16>
    %62 = vector.shape_cast %61 : vector<1x4x384xbf16> to vector<4x384xbf16>
    %c1_46 = arith.constant 1 : index
    %c0_47 = arith.constant 0 : index
    %c2_48 = arith.constant 2 : index
    %63 = vector.load %arg1[%c1_46, %c0_47, %c2_48] : memref<2x4x432xbf16, #tpu.memory_space<vmem>>, vector<1x4x384xbf16>
    %64 = vector.shape_cast %63 : vector<1x4x384xbf16> to vector<4x384xbf16>
    %c1_49 = arith.constant 1 : index
    %c0_50 = arith.constant 0 : index
    %c18_51 = arith.constant 18 : index
    %65 = vector.load %arg1[%c1_49, %c0_50, %c18_51] : memref<2x4x432xbf16, #tpu.memory_space<vmem>>, vector<1x4x384xbf16>
    %66 = vector.shape_cast %65 : vector<1x4x384xbf16> to vector<4x384xbf16>
    %c1_52 = arith.constant 1 : index
    %c0_53 = arith.constant 0 : index
    %c19_54 = arith.constant 19 : index
    %67 = vector.load %arg1[%c1_52, %c0_53, %c19_54] : memref<2x4x432xbf16, #tpu.memory_space<vmem>>, vector<1x4x384xbf16>
    %68 = vector.shape_cast %67 : vector<1x4x384xbf16> to vector<4x384xbf16>
    %c1_55 = arith.constant 1 : index
    %c0_56 = arith.constant 0 : index
    %c20_57 = arith.constant 20 : index
    %69 = vector.load %arg1[%c1_55, %c0_56, %c20_57] : memref<2x4x432xbf16, #tpu.memory_space<vmem>>, vector<1x4x384xbf16>
    %70 = vector.shape_cast %69 : vector<1x4x384xbf16> to vector<4x384xbf16>
    %c1_58 = arith.constant 1 : index
    %c0_59 = arith.constant 0 : index
    %c36_60 = arith.constant 36 : index
    %71 = vector.load %arg1[%c1_58, %c0_59, %c36_60] : memref<2x4x432xbf16, #tpu.memory_space<vmem>>, vector<1x4x384xbf16>
    %72 = vector.shape_cast %71 : vector<1x4x384xbf16> to vector<4x384xbf16>
    %c1_61 = arith.constant 1 : index
    %c0_62 = arith.constant 0 : index
    %c37_63 = arith.constant 37 : index
    %73 = vector.load %arg1[%c1_61, %c0_62, %c37_63] : memref<2x4x432xbf16, #tpu.memory_space<vmem>>, vector<1x4x384xbf16>
    %74 = vector.shape_cast %73 : vector<1x4x384xbf16> to vector<4x384xbf16>
    %c1_64 = arith.constant 1 : index
    %c0_65 = arith.constant 0 : index
    %c38_66 = arith.constant 38 : index
    %75 = vector.load %arg1[%c1_64, %c0_65, %c38_66] : memref<2x4x432xbf16, #tpu.memory_space<vmem>>, vector<1x4x384xbf16>
    %76 = vector.shape_cast %75 : vector<1x4x384xbf16> to vector<4x384xbf16>
    %77 = tpu.concatenate %60, %62, %64, %66, %68, %70, %72, %74, %76 in 0 : vector<4x384xbf16>, vector<4x384xbf16>, vector<4x384xbf16>, vector<4x384xbf16>, vector<4x384xbf16>, vector<4x384xbf16>, vector<4x384xbf16>, vector<4x384xbf16>, vector<4x384xbf16> -> vector<36x384xbf16>
    %cst_67 = arith.constant dense<0.000000e+00> : vector<8x384xf32>
    %78 = tpu.matmul %4, %77, %cst_67 {dimension_numbers = #tpu.dot_dimension_numbers<[1], [0], [0], [1], [0, 0, 1, 1], [], []>} : vector<8x36xbf16>, vector<36x384xbf16>, vector<8x384xf32> -> vector<8x384xf32>
    %79 = vector.broadcast %0 : vector<1x384xf32> to vector<8x384xf32>
    %80 = arith.mulf %78, %79 : vector<8x384xf32>
    %cst_68 = arith.constant dense<0.000000e+00> : vector<8xf32>
    %81 = vector.multi_reduction <add>, %80, %cst_68 [1] : vector<8x384xf32> to vector<8xf32>
    %82 = vector.shape_cast %81 : vector<8xf32> to vector<8x1xf32>
    %83 = arith.mulf %80, %78 : vector<8x384xf32>
    %cst_69 = arith.constant dense<0.000000e+00> : vector<8xf32>
    %84 = vector.multi_reduction <add>, %83, %cst_69 [1] : vector<8x384xf32> to vector<8xf32>
    %85 = vector.shape_cast %84 : vector<8xf32> to vector<8x1xf32>
    %cst_70 = arith.constant dense<0.000000e+00> : vector<8x1xf32>
    %86 = tpu.matmul %1, %82, %cst_70 {dimension_numbers = #tpu.dot_dimension_numbers<[1], [0], [0], [1], [0, 0, 1, 1], [], []>} : vector<8x8xf32>, vector<8x1xf32>, vector<8x1xf32> -> vector<8x1xf32>
    %cst_71 = arith.constant dense<0.000000e+00> : vector<8x1xf32>
    %87 = tpu.matmul %1, %85, %cst_71 {dimension_numbers = #tpu.dot_dimension_numbers<[1], [0], [0], [1], [0, 0, 1, 1], [], []>} : vector<8x8xf32>, vector<8x1xf32>, vector<8x1xf32> -> vector<8x1xf32>
    %88 = arith.mulf %86, %86 : vector<8x1xf32>
    %89 = arith.subf %87, %88 : vector<8x1xf32>
    %cst_72 = arith.constant 0.000000e+00 : f32
    %90 = vector.broadcast %cst_72 : f32 to vector<8x1xf32>
    %91 = arith.maximumf %89, %90 : vector<8x1xf32>
    %cst_73 = arith.constant 9.99999974E-6 : f32
    %92 = vector.broadcast %cst_73 : f32 to vector<8x1xf32>
    %93 = arith.addf %91, %92 : vector<8x1xf32>
    %94 = math.rsqrt %93 : vector<8x1xf32>
    %95 = arith.mulf %2, %94 : vector<8x1xf32>
    %96 = arith.mulf %86, %95 : vector<8x1xf32>
    %97 = arith.subf %3, %96 : vector<8x1xf32>
    %98 = vector.broadcast %95 : vector<8x1xf32> to vector<8x384xf32>
    %99 = arith.mulf %78, %98 : vector<8x384xf32>
    %100 = vector.broadcast %97 : vector<8x1xf32> to vector<8x384xf32>
    %101 = arith.addf %99, %100 : vector<8x384xf32>
    %cst_74 = arith.constant 0.000000e+00 : f32
    %102 = vector.broadcast %cst_74 : f32 to vector<8x384xf32>
    %103 = arith.cmpf ogt, %101, %102 : vector<8x384xf32>
    %cst_75 = arith.constant 0.000000e+00 : f32
    %104 = vector.broadcast %cst_75 : f32 to vector<8x384xf32>
    %105 = arith.minimumf %101, %104 : vector<8x384xf32>
    %106 = math.exp %105 : vector<8x384xf32>
    %cst_76 = arith.constant 1.000000e+00 : f32
    %107 = vector.broadcast %cst_76 : f32 to vector<8x384xf32>
    %108 = arith.subf %106, %107 : vector<8x384xf32>
    %109 = arith.select %103, %101, %108 : vector<8x384xi1>, vector<8x384xf32>
    %c1_77 = arith.constant 1 : index
    %c0_78 = arith.constant 0 : index
    %c0_79 = arith.constant 0 : index
    %110 = vector.load %arg7[%c1_77, %c0_78, %c0_79] : memref<2x8x384xf32, #tpu.memory_space<vmem>>, vector<1x8x384xf32>
    %111 = vector.shape_cast %110 : vector<1x8x384xf32> to vector<8x384xf32>
    %112 = vector.shape_cast %109 : vector<8x384xf32> to vector<1x8x384xf32>
    tpu.vector_store %arg7[%c1_77, %c0_78, %c0_79], %112 {strides = array<i32>} : memref<2x8x384xf32, #tpu.memory_space<vmem>>, vector<1x8x384xf32>,
    return
  }
  func.func @transform_0(%arg0: i32) -> (i32, i32, i32) {
    %c0_i32 = arith.constant 0 : i32
    %c0_i32_0 = arith.constant 0 : i32
    %c0_i32_1 = arith.constant 0 : i32
    return %arg0, %c0_i32, %c0_i32_0 : i32, i32, i32
  }
  func.func @transform_1(%arg0: i32) -> (i32, i32) {
    %c0_i32 = arith.constant 0 : i32
    %c0_i32_0 = arith.constant 0 : i32
    %c0_i32_1 = arith.constant 0 : i32
    return %c0_i32, %c0_i32_0 : i32, i32
  }
  func.func @transform_2(%arg0: i32) -> (i32, i32) {
    %c0_i32 = arith.constant 0 : i32
    %c0_i32_0 = arith.constant 0 : i32
    %c0_i32_1 = arith.constant 0 : i32
    return %c0_i32, %c0_i32_0 : i32, i32
  }
  func.func @transform_3(%arg0: i32) -> (i32, i32) {
    %c0_i32 = arith.constant 0 : i32
    %c0_i32_0 = arith.constant 0 : i32
    %c0_i32_1 = arith.constant 0 : i32
    return %c0_i32, %c0_i32_0 : i32, i32
  }
  func.func @transform_4(%arg0: i32) -> (i32, i32) {
    %c0_i32 = arith.constant 0 : i32
    %c0_i32_0 = arith.constant 0 : i32
    %c0_i32_1 = arith.constant 0 : i32
    return %c0_i32, %c0_i32_0 : i32, i32
  }
  func.func @transform_5(%arg0: i32) -> (i32, i32) {
    %c0_i32 = arith.constant 0 : i32
    %c0_i32_0 = arith.constant 0 : i32
    %c0_i32_1 = arith.constant 0 : i32
    return %c0_i32, %c0_i32_0 : i32, i32
  }
  func.func @transform_6(%arg0: i32) -> (i32, i32, i32) {
    %c0_i32 = arith.constant 0 : i32
    %c0_i32_0 = arith.constant 0 : i32
    %c0_i32_1 = arith.constant 0 : i32
    return %arg0, %c0_i32, %c0_i32_0 : i32, i32, i32
  }
}

</mosaic_0001>

<llo_original>
// kernel: tpu_custom_call.1
$region0: #{tpu_custom_call.1}
  #allocation0 [shape = 'u32[]', space=smem, size = 0x4, offset = 0x4, fixed_abs, tag = 'smem constant byte address 0x4 - core index']
  #allocation1 [shape = 'u32[72,128]{1,0:T(1,128)}', space=vmem, size = 0x9000, scoped, tag = 'internal scratch']
  %s0 = inlined_call_operand.vmem [shape: bf16[2,4,432], index: 0, kind: input, shape index: {}]
  %s1 = inlined_call_operand.hbm [shape: bf16[8,36], index: 1, kind: input, shape index: {}]
  %s2 = inlined_call_operand.hbm [shape: f32[8,8], index: 2, kind: input, shape index: {}]
  %s3 = inlined_call_operand.vmem [shape: f32[8,1], index: 3, kind: input, shape index: {}]
  %s4 = inlined_call_operand.vmem [shape: f32[8,1], index: 4, kind: input, shape index: {}]
  %s5 = inlined_call_operand.vmem [shape: f32[1,384], index: 5, kind: input, shape index: {}]
  %s6 = inlined_call_operand.hbm [shape: f32[2,8,384], index: 6, kind: output, shape index: {}]
  %s7 = sld [smem:[#allocation0]]
  $region42: #{tpu_custom_call.1} parent=0
    _
  %s9 = ssub.s32 1, %s7
  %s10 = scalar_select 0, %s9, %s7
  $region1: #{tpu_custom_call.1} parent=0
    #allocation2 [shape = 'u8[2048]{0}', space=vmem, size = 0x800, scoped, tag = 'input window, operand 1, single buffered']
    #allocation3 [shape = 's32[1]{0}', space=sflag, size = 0x4, scoped, tag = 'scoped memory for tpu_custom_call.1']
    #allocation4 [shape = 's32[1]{0}', space=sflag, size = 0x4, scoped, tag = 'scoped memory for tpu_custom_call.1']
    #allocation5 [shape = 'u8[4096]{0}', space=vmem, size = 0x1000, scoped, tag = 'input window, operand 2, single buffered']
    #allocation6 [shape = 's32[1]{0}', space=sflag, size = 0x4, scoped, tag = 'scoped memory for tpu_custom_call.1']
    #allocation7 [shape = 'u8[24576]{0}', space=vmem, size = 0x6000, scoped, tag = 'output window, operand 0, single buffered']
    %11 = vsyncpa [#allocation3], 0
    %12 = vsyncpa [#allocation6], 0
    %13 = vsyncpa [#allocation4], 0
    // Predicated region
    $region2: #{tpu_custom_call.1} parent=1 // pred_check
      _
    $region3: #{tpu_custom_call.1} parent=1 // pred_check_branch
      %15 = sbr.rel (0) target = $region5
    $region4: #{tpu_custom_call.1} parent=1 // pred_region
      _
    $region5: #{tpu_custom_call.1} parent=1 // pred_fallthru
      _
    // Predicated region
    $region6: #{tpu_custom_call.1} parent=1 // pred_check
      _
    $region7: #{tpu_custom_call.1} parent=1 // pred_check_branch
      %17 = sbr.rel (0) target = $region9
    $region8: #{tpu_custom_call.1} parent=1 // pred_region
      %19 = vsyncadd [#allocation3], 0
      %s21 = sshll.u32 %s1, 4
      %s22 = int_to_ptr.hbm [resolvable:$true] %s21
      %s23 = sshll.u32 [#allocation2], 4
      %s24 = int_to_ptr.vmem [resolvable:$true] %s23
      %26 = dma.hbm_to_vmem [thread:$0]  %s22, 64, %s24, [#allocation3]
    $region9: #{tpu_custom_call.1} parent=1 // pred_fallthru
      _
    // Predicated region
    $region10: #{tpu_custom_call.1} parent=1 // pred_check
      _
    $region11: #{tpu_custom_call.1} parent=1 // pred_check_branch
      %28 = sbr.rel (0) target = $region13
    $region12: #{tpu_custom_call.1} parent=1 // pred_region
      %30 = vsyncadd [#allocation6], 0
      %s32 = sshll.u32 %s2, 4
      %s33 = int_to_ptr.hbm [resolvable:$true] %s32
      %s34 = sshll.u32 [#allocation5], 4
      %s35 = int_to_ptr.vmem [resolvable:$true] %s34
      %37 = dma.hbm_to_vmem [thread:$0]  %s33, 128, %s35, [#allocation6]
    $region13: #{tpu_custom_call.1} parent=1 // pred_fallthru
      _
    // Predicated region
    $region14: #{tpu_custom_call.1} parent=1 // pred_check
      _
    $region15: #{tpu_custom_call.1} parent=1 // pred_check_branch
      %39 = sbr.rel (0) target = $region17
    $region16: #{tpu_custom_call.1} parent=1 // pred_region
      _
    $region17: #{tpu_custom_call.1} parent=1 // pred_fallthru
      _
    // Predicated region
    $region18: #{tpu_custom_call.1} parent=1 // pred_check
      _
    $region19: #{tpu_custom_call.1} parent=1 // pred_check_branch
      %41 = sbr.rel (0) target = $region21
    $region20: #{tpu_custom_call.1} parent=1 // pred_region
      _
    $region21: #{tpu_custom_call.1} parent=1 // pred_fallthru
      _
    // Predicated region
    $region22: #{tpu_custom_call.1} parent=1 // pred_check
      _
    $region23: #{tpu_custom_call.1} parent=1 // pred_check_branch
      %43 = sbr.rel (0) target = $region25
    $region24: #{tpu_custom_call.1} parent=1 // pred_region
      _
    $region25: #{tpu_custom_call.1} parent=1 // pred_fallthru
      _
    // Predicated region
    $region26: #{tpu_custom_call.1} parent=1 // pred_check
      _
    $region27: #{tpu_custom_call.1} parent=1 // pred_check_branch
      %45 = sbr.rel (0) target = $region29
    $region28: #{tpu_custom_call.1} parent=1 // pred_region
      %47 = dma.done [#allocation3], 64
    $region29: #{tpu_custom_call.1} parent=1 // pred_fallthru
      _
    // Predicated region
    $region30: #{tpu_custom_call.1} parent=1 // pred_check
      _
    $region31: #{tpu_custom_call.1} parent=1 // pred_check_branch
      %49 = sbr.rel (0) target = $region33
    $region32: #{tpu_custom_call.1} parent=1 // pred_region
      %51 = dma.done [#allocation6], 128
    $region33: #{tpu_custom_call.1} parent=1 // pred_fallthru
      _
    %v53 = vld [vmem:[%s5] sm:$0x7]
    %v54 = vld [vmem:[#allocation5] sm:$0xff]
    %v55 = vld [vmem:[%s3] sm:$0xff]
    %v56 = vld [vmem:[%s4] sm:$0xff]
    %v57 = vld [vmem:[#allocation2] sm:$0xf]
    %v58 = vld [vmem:[%s0] sm:$0x3f]
    %v59 = vld [vmem:[%s0] sm:$0xff]
    %61 = vst [vmem:[#allocation1] ss:$4 sm:$0xff] %v58
    %v62 = vld.sshfl [vmem:[#allocation1] sm:$0xff pattern:$0x73625140]
    %v63 = vld.sshfl [vmem:[#allocation1 + $0x8] sm:$0xff pattern:$0x73625140]
    %v64 = vld.sshfl [vmem:[#allocation1 + $0x10] sm:$0xff pattern:$0x73625140]
    %s66 = scalar_lea.vmem [#allocation1], 1
    %67 = vst [vmem:[%s66] ss:$4 sm:$0xff] %v59
    %v68 = vld.sshfl [vmem:[#allocation1] sm:$0xff pattern:$0x73625140]
    %v70 = vld.sshfl [vmem:[#allocation1 + $0x8] sm:$0xff pattern:$0x73625140]
    %v72 = vld.sshfl [vmem:[#allocation1 + $0x10] sm:$0xff pattern:$0x73625140]
    %v74 = vld.sshfl [vmem:[#allocation1 + $0x18] sm:$0xff pattern:$0x73625140]
    %76 = vrot.lane.b32.xlu0 %v68, 127
    %v77 = vpop.permute.xlu0 %76
    %78 = vrot.lane.b32.xlu0 %v70, 127
    %v79 = vpop.permute.xlu0 %78
    %80 = vrot.lane.b32.xlu0 %v72, 127
    %v81 = vpop.permute.xlu0 %80
    %82 = vrot.lane.b32.xlu0 %v74, 127
    %v83 = vpop.permute.xlu0 %82
    %vm84 = vcmask 1039360
    %v85 = vsel %vm84, %v77, %v79
    %v86 = vsel %vm84, %v79, %v81
    %v87 = vsel %vm84, %v81, %v83
    %s88 = scalar_lea.vmem [#allocation1], 2
    %89 = vst [vmem:[%s88] ss:$4 sm:$0xff] %v59
    %v90 = vld.sshfl [vmem:[#allocation1] sm:$0xff pattern:$0x73625140]
    %v92 = vld.sshfl [vmem:[#allocation1 + $0x8] sm:$0xff pattern:$0x73625140]
    %v94 = vld.sshfl [vmem:[#allocation1 + $0x10] sm:$0xff pattern:$0x73625140]
    %v96 = vld.sshfl [vmem:[#allocation1 + $0x18] sm:$0xff pattern:$0x73625140]
    %98 = vrot.lane.b32.xlu0 %v90, 126
    %v99 = vpop.permute.xlu0 %98
    %100 = vrot.lane.b32.xlu0 %v92, 126
    %v101 = vpop.permute.xlu0 %100
    %102 = vrot.lane.b32.xlu0 %v94, 126
    %v103 = vpop.permute.xlu0 %102
    %104 = vrot.lane.b32.xlu0 %v96, 126
    %v105 = vpop.permute.xlu0 %104
    %vm106 = vcmask 1031168
    %v107 = vsel %vm106, %v99, %v101
    %v108 = vsel %vm106, %v101, %v103
    %v109 = vsel %vm106, %v103, %v105
    %s110 = scalar_lea.vmem [#allocation1], 3
    %111 = vst [vmem:[%s110] ss:$4 sm:$0xff] %v59
    %v112 = vld.sshfl [vmem:[#allocation1] sm:$0xff pattern:$0x73625140]
    %v114 = vld.sshfl [vmem:[#allocation1 + $0x8] sm:$0xff pattern:$0x73625140]
    %v116 = vld.sshfl [vmem:[#allocation1 + $0x10] sm:$0xff pattern:$0x73625140]
    %v118 = vld.sshfl [vmem:[#allocation1 + $0x18] sm:$0xff pattern:$0x73625140]
    %120 = vrot.lane.b32.xlu0 %v112, 110
    %v121 = vpop.permute.xlu0 %120
    %122 = vrot.lane.b32.xlu0 %v114, 110
    %v123 = vpop.permute.xlu0 %122
    %124 = vrot.lane.b32.xlu0 %v116, 110
    %v125 = vpop.permute.xlu0 %124
    %126 = vrot.lane.b32.xlu0 %v118, 110
    %v127 = vpop.permute.xlu0 %126
    %vm128 = vcmask 900096
    %v129 = vsel %vm128, %v121, %v123
    %v130 = vsel %vm128, %v123, %v125
    %v131 = vsel %vm128, %v125, %v127
    %132 = vst [vmem:[#allocation1] ss:$4 sm:$0xff] %v59
    %v133 = vld.sshfl [vmem:[#allocation1] sm:$0xff pattern:$0x73625140]
    %v135 = vld.sshfl [vmem:[#allocation1 + $0x8] sm:$0xff pattern:$0x73625140]
    %v137 = vld.sshfl [vmem:[#allocation1 + $0x10] sm:$0xff pattern:$0x73625140]
    %v139 = vld.sshfl [vmem:[#allocation1 + $0x18] sm:$0xff pattern:$0x73625140]
    %141 = vrot.lane.b32.xlu0 %v133, 109
    %v142 = vpop.permute.xlu0 %141
    %143 = vrot.lane.b32.xlu0 %v135, 109
    %v144 = vpop.permute.xlu0 %143
    %145 = vrot.lane.b32.xlu0 %v137, 109
    %v146 = vpop.permute.xlu0 %145
    %147 = vrot.lane.b32.xlu0 %v139, 109
    %v148 = vpop.permute.xlu0 %147
    %vm149 = vcmask 891904
    %v150 = vsel %vm149, %v142, %v144
    %v151 = vsel %vm149, %v144, %v146
    %v152 = vsel %vm149, %v146, %v148
    %s153 = scalar_lea.vmem [#allocation1], 1
    %154 = vst [vmem:[%s153] ss:$4 sm:$0xff] %v59
    %v155 = vld.sshfl [vmem:[#allocation1] sm:$0xff pattern:$0x73625140]
    %v157 = vld.sshfl [vmem:[#allocation1 + $0x8] sm:$0xff pattern:$0x73625140]
    %v159 = vld.sshfl [vmem:[#allocation1 + $0x10] sm:$0xff pattern:$0x73625140]
    %v161 = vld.sshfl [vmem:[#allocation1 + $0x18] sm:$0xff pattern:$0x73625140]
    %163 = vrot.lane.b32.xlu0 %v155, 108
    %v164 = vpop.permute.xlu0 %163
    %165 = vrot.lane.b32.xlu0 %v157, 108
    %v166 = vpop.permute.xlu0 %165
    %167 = vrot.lane.b32.xlu0 %v159, 108
    %v168 = vpop.permute.xlu0 %167
    %169 = vrot.lane.b32.xlu0 %v161, 108
    %v170 = vpop.permute.xlu0 %169
    %vm171 = vcmask 883712
    %v172 = vsel %vm171, %v164, %v166
    %v173 = vsel %vm171, %v166, %v168
    %v174 = vsel %vm171, %v168, %v170
    %s175 = scalar_lea.vmem [#allocation1], 2
    %176 = vst [vmem:[%s175] ss:$4 sm:$0xff] %v59
    %v177 = vld.sshfl [vmem:[#allocation1] sm:$0xff pattern:$0x73625140]
    %v179 = vld.sshfl [vmem:[#allocation1 + $0x8] sm:$0xff pattern:$0x73625140]
    %v181 = vld.sshfl [vmem:[#allocation1 + $0x10] sm:$0xff pattern:$0x73625140]
    %v183 = vld.sshfl [vmem:[#allocation1 + $0x18] sm:$0xff pattern:$0x73625140]
    %185 = vrot.lane.b32.xlu0 %v177, 92
    %v186 = vpop.permute.xlu0 %185
    %187 = vrot.lane.b32.xlu0 %v179, 92
    %v188 = vpop.permute.xlu0 %187
    %189 = vrot.lane.b32.xlu0 %v181, 92
    %v190 = vpop.permute.xlu0 %189
    %191 = vrot.lane.b32.xlu0 %v183, 92
    %v192 = vpop.permute.xlu0 %191
    %vm193 = vcmask 752640
    %v194 = vsel %vm193, %v186, %v188
    %v195 = vsel %vm193, %v188, %v190
    %v196 = vsel %vm193, %v190, %v192
    %s197 = scalar_lea.vmem [#allocation1], 3
    %198 = vst [vmem:[%s197] ss:$4 sm:$0xff] %v59
    %v199 = vld.sshfl [vmem:[#allocation1] sm:$0xff pattern:$0x73625140]
    %v201 = vld.sshfl [vmem:[#allocation1 + $0x8] sm:$0xff pattern:$0x73625140]
    %v203 = vld.sshfl [vmem:[#allocation1 + $0x10] sm:$0xff pattern:$0x73625140]
    %v205 = vld.sshfl [vmem:[#allocation1 + $0x18] sm:$0xff pattern:$0x73625140]
    %207 = vrot.lane.b32.xlu0 %v199, 91
    %v208 = vpop.permute.xlu0 %207
    %209 = vrot.lane.b32.xlu0 %v201, 91
    %v210 = vpop.permute.xlu0 %209
    %211 = vrot.lane.b32.xlu0 %v203, 91
    %v212 = vpop.permute.xlu0 %211
    %213 = vrot.lane.b32.xlu0 %v205, 91
    %v214 = vpop.permute.xlu0 %213
    %vm215 = vcmask 744448
    %v216 = vsel %vm215, %v208, %v210
    %v217 = vsel %vm215, %v210, %v212
    %v218 = vsel %vm215, %v212, %v214
    %219 = vst [vmem:[#allocation1] ss:$4 sm:$0xff] %v59
    %v220 = vld.sshfl [vmem:[#allocation1] sm:$0xff pattern:$0x73625140]
    %v222 = vld.sshfl [vmem:[#allocation1 + $0x8] sm:$0xff pattern:$0x73625140]
    %v224 = vld.sshfl [vmem:[#allocation1 + $0x10] sm:$0xff pattern:$0x73625140]
    %v226 = vld.sshfl [vmem:[#allocation1 + $0x18] sm:$0xff pattern:$0x73625140]
    %228 = vrot.lane.b32.xlu0 %v220, 90
    %v229 = vpop.permute.xlu0 %228
    %230 = vrot.lane.b32.xlu0 %v222, 90
    %v231 = vpop.permute.xlu0 %230
    %232 = vrot.lane.b32.xlu0 %v224, 90
    %v233 = vpop.permute.xlu0 %232
    %234 = vrot.lane.b32.xlu0 %v226, 90
    %v235 = vpop.permute.xlu0 %234
    %vm236 = vcmask 736256
    %v237 = vsel %vm236, %v229, %v231
    %v238 = vsel %vm236, %v231, %v233
    %v239 = vsel %vm236, %v233, %v235
    %vm240 = vcmask 1041408
    %v242 = vsel %vm240, %v62, %v85
    %v244 = vsel %vm240, %v63, %v86
    %v246 = vsel %vm240, %v64, %v87
    %vm247 = vcmask 1043456
    %v249 = vsel %vm247, %v242, %v107
    %v251 = vsel %vm247, %v244, %v108
    %v253 = vsel %vm247, %v246, %v109
    %vm254 = vcmask 1045504
    %v256 = vsel %vm254, %v249, %v129
    %v259 = vsel %vm254, %v251, %v130
    %v262 = vsel %vm254, %v253, %v131
    %v266 = vsel %vm240, %v150, %v172
    %v269 = vsel %vm240, %v151, %v173
    %v272 = vsel %vm240, %v152, %v174
    %v274 = vsel %vm247, %v266, %v194
    %v276 = vsel %vm247, %v269, %v195
    %v278 = vsel %vm247, %v272, %v196
    %v280 = vsel %vm254, %v274, %v216
    %v283 = vsel %vm254, %v276, %v217
    %v286 = vsel %vm254, %v278, %v218
    %vm288 = vcmask 293888
    %v290 = vsel %vm288, %v57, 0
    %v293 = vsel %vm240, %v237, 0
    %v296 = vsel %vm240, %v238, 0
    %v299 = vsel %vm240, %v239, 0
    %301 = vmatpush.bf16.msra.mxu0 0
    %302 = vmatpush.bf16.msra.mxu0 0
    %303 = vmatpush.bf16.msra.mxu0 0
    %304 = vmatpush.bf16.msra.mxu0 0
    %305 = vmatpush.bf16.msra.mxu0 0
    %306 = vmatpush.bf16.msra.mxu0 %v293
    %307 = vmatpush.bf16.msra.mxu0 %v280
    %308 = vmatpush.bf16.msra.mxu0 %v256
    %309 = vmatmul.bf16.gmra.mxu0 %v290
    %v310 = vpop.f32.mrf.mxu0
    %v311 = vadd.f32 0.0, %v310
    %v312 = vpop.f32.mrf.mxu0
    %313 = vdwg.mxu0
    %314 = vmatpush.bf16.msra.mxu0 0
    %315 = vmatpush.bf16.msra.mxu0 0
    %316 = vmatpush.bf16.msra.mxu0 0
    %317 = vmatpush.bf16.msra.mxu0 0
    %318 = vmatpush.bf16.msra.mxu0 0
    %319 = vmatpush.bf16.msra.mxu0 %v296
    %320 = vmatpush.bf16.msra.mxu0 %v283
    %321 = vmatpush.bf16.msra.mxu0 %v259
    %322 = vmatmul.bf16.gmra.mxu0 %v290
    %v323 = vpop.f32.mrf.mxu0
    %v324 = vadd.f32 0.0, %v323
    %v325 = vpop.f32.mrf.mxu0
    %326 = vdwg.mxu0
    %327 = vmatpush.bf16.msra.mxu0 0
    %328 = vmatpush.bf16.msra.mxu0 0
    %329 = vmatpush.bf16.msra.mxu0 0
    %330 = vmatpush.bf16.msra.mxu0 0
    %331 = vmatpush.bf16.msra.mxu0 0
    %332 = vmatpush.bf16.msra.mxu0 %v299
    %333 = vmatpush.bf16.msra.mxu0 %v286
    %334 = vmatpush.bf16.msra.mxu0 %v262
    %335 = vmatmul.bf16.gmra.mxu0 %v290
    %v336 = vpop.f32.mrf.mxu0
    %v337 = vadd.f32 0.0, %v336
    %v338 = vpop.f32.mrf.mxu0
    %339 = vdwg.mxu0
    %v341 = vperm.slane %v53, 0
    %v342 = vperm.slane %v53, 1
    %v343 = vperm.slane %v53, 2
    %v347 = vmul.f32 %v311, %v341
    %v348 = vmul.f32 %v324, %v342
    %v349 = vmul.f32 %v337, %v343
    %v350 = vadd.f32 %v347, %v348
    %v351 = vadd.f32 %v350, %v349
    %352 = vadd.xlane.f32.xlu0 %v351
    %v353 = vpop.xlane.xlu0 %352
    %v354 = vmul.f32 %v347, %v311
    %v355 = vmul.f32 %v348, %v324
    %v356 = vmul.f32 %v349, %v337
    %v357 = vadd.f32 %v354, %v355
    %v358 = vadd.f32 %v357, %v356
    %359 = vadd.xlane.f32.xlu0 %v358
    %v360 = vpop.xlane.xlu0 %359
    %vm361 = vcmask 64512
    %v363 = vsel %vm361, %v54, 0
    %365 = vmatpush.msra.mxu0 0.0
    %366 = vmatpush.msra.mxu0 0.0
    %367 = vmatpush.msra.mxu0 0.0
    %368 = vmatpush.msra.mxu0 0.0
    %369 = vmatpush.msra.mxu0 0.0
    %370 = vmatpush.msra.mxu0 0.0
    %371 = vmatpush.msra.mxu0 0.0
    %372 = vmatpush.msra.mxu0 0.0
    %373 = vmatpush.msra.mxu0 0.0
    %374 = vmatpush.msra.mxu0 0.0
    %375 = vmatpush.msra.mxu0 0.0
    %376 = vmatpush.msra.mxu0 0.0
    %377 = vmatpush.msra.mxu0 0.0
    %378 = vmatpush.msra.mxu0 0.0
    %379 = vmatpush.msra.mxu0 0.0
    %380 = vmatpush.msra.mxu0 %v353
    %381 = vmatmul.f32.gmra.mxu0 %v363
    %v382 = vpop.f32.mrf.mxu0
    %v383 = vadd.f32 0.0, %v382
    %384 = vdwg.mxu0
    %385 = vmatpush.msra.mxu0 0.0
    %386 = vmatpush.msra.mxu0 0.0
    %387 = vmatpush.msra.mxu0 0.0
    %388 = vmatpush.msra.mxu0 0.0
    %389 = vmatpush.msra.mxu0 0.0
    %390 = vmatpush.msra.mxu0 0.0
    %391 = vmatpush.msra.mxu0 0.0
    %392 = vmatpush.msra.mxu0 0.0
    %393 = vmatpush.msra.mxu0 0.0
    %394 = vmatpush.msra.mxu0 0.0
    %395 = vmatpush.msra.mxu0 0.0
    %396 = vmatpush.msra.mxu0 0.0
    %397 = vmatpush.msra.mxu0 0.0
    %398 = vmatpush.msra.mxu0 0.0
    %399 = vmatpush.msra.mxu0 0.0
    %400 = vmatpush.msra.mxu0 %v360
    %401 = vmatmul.f32.gmra.mxu0 %v363
    %v402 = vpop.f32.mrf.mxu0
    %v403 = vadd.f32 0.0, %v402
    %404 = vdwg.mxu0
    %v405 = vmul.f32 %v383, %v383
    %v406 = vsub.f32 %v403, %v405
    %v407 = vmax.f32 %v406, 0.0
    %v408 = vadd.f32 %v407, 1e-05
    %v409 = vrsqrt.pop %v408
    %v410 = vmul.f32 %v409, %v408
    %v411 = vmul.f32 %v410, %v409
    %v412 = vmul.f32 0.5, %v411
    %v413 = vsub.f32 1.5, %v412
    %v414 = vmul.f32 %v409, %v413
    %vm415 = vweird.f32 %v408
    %vm416 = vweird.f32 %v409
    %vm417 = vmor %vm415, %vm416
    %v418 = vsel %vm417, %v409, %v414
    %v419 = vmul.f32 %v55, %v418
    %v420 = vmul.f32 %v383, %v419
    %v421 = vsub.f32 %v56, %v420
    %423 = vset.pattern.permute.xlu0 0
    %424 = vperm.xlu0 %423, %v419
    %v425 = vpop.permute.xlu0 %424
    %v427 = vmul.f32 %v311, %v425
    %v428 = vmul.f32 %v324, %v425
    %v429 = vmul.f32 %v337, %v425
    %431 = vset.pattern.permute.xlu0 0
    %432 = vperm.xlu0 %431, %v421
    %v433 = vpop.permute.xlu0 %432
    %v435 = vadd.f32 %v427, %v433
    %v436 = vadd.f32 %v428, %v433
    %v437 = vadd.f32 %v429, %v433
    %vm438 = vcmp.gt.f32.partialorder %v435, 0.0
    %vm439 = vcmp.gt.f32.partialorder %v436, 0.0
    %vm440 = vcmp.gt.f32.partialorder %v437, 0.0
    %v441 = vmin.f32 %v435, 0.0
    %v442 = vmin.f32 %v436, 0.0
    %v443 = vmin.f32 %v437, 0.0
    %v444 = vmul.f32 %v441, 1.442695
    %v445 = vpow.pop %v444
    %v446 = vmul.f32 %v442, 1.442695
    %v447 = vpow.pop %v446
    %v448 = vmul.f32 %v443, 1.442695
    %v449 = vpow.pop %v448
    %v450 = vsub.f32 %v445, 1.0
    %v451 = vsub.f32 %v447, 1.0
    %v452 = vsub.f32 %v449, 1.0
    %v453 = vsel %vm438, %v435, %v450
    %v454 = vsel %vm439, %v436, %v451
    %v455 = vsel %vm440, %v437, %v452
    %456 = vst [vmem:[#allocation7] sm:$0xff] %v453
    %457 = vst [vmem:[#allocation7 + $0x8] sm:$0xff] %v454
    %458 = vst [vmem:[#allocation7 + $0x10] sm:$0xff] %v455
    %s459 = scalar_lea.vmem %s0, 8
    %v460 = vld [vmem:[%s459] sm:$0x3f]
    %v461 = vld [vmem:[%s459] sm:$0xff]
    %463 = vst [vmem:[#allocation1] ss:$4 sm:$0xff] %v460
    %v464 = vld.sshfl [vmem:[#allocation1] sm:$0xff pattern:$0x73625140]
    %v465 = vld.sshfl [vmem:[#allocation1 + $0x8] sm:$0xff pattern:$0x73625140]
    %v466 = vld.sshfl [vmem:[#allocation1 + $0x10] sm:$0xff pattern:$0x73625140]
    %s468 = scalar_lea.vmem [#allocation1], 1
    %469 = vst [vmem:[%s468] ss:$4 sm:$0xff] %v461
    %v470 = vld.sshfl [vmem:[#allocation1] sm:$0xff pattern:$0x73625140]
    %v472 = vld.sshfl [vmem:[#allocation1 + $0x8] sm:$0xff pattern:$0x73625140]
    %v474 = vld.sshfl [vmem:[#allocation1 + $0x10] sm:$0xff pattern:$0x73625140]
    %v476 = vld.sshfl [vmem:[#allocation1 + $0x18] sm:$0xff pattern:$0x73625140]
    %478 = vrot.lane.b32.xlu0 %v470, 127
    %v479 = vpop.permute.xlu0 %478
    %480 = vrot.lane.b32.xlu0 %v472, 127
    %v481 = vpop.permute.xlu0 %480
    %482 = vrot.lane.b32.xlu0 %v474, 127
    %v483 = vpop.permute.xlu0 %482
    %484 = vrot.lane.b32.xlu0 %v476, 127
    %v485 = vpop.permute.xlu0 %484
    %v486 = vsel %vm84, %v479, %v481
    %v487 = vsel %vm84, %v481, %v483
    %v488 = vsel %vm84, %v483, %v485
    %s489 = scalar_lea.vmem [#allocation1], 2
    %490 = vst [vmem:[%s489] ss:$4 sm:$0xff] %v461
    %v491 = vld.sshfl [vmem:[#allocation1] sm:$0xff pattern:$0x73625140]
    %v493 = vld.sshfl [vmem:[#allocation1 + $0x8] sm:$0xff pattern:$0x73625140]
    %v495 = vld.sshfl [vmem:[#allocation1 + $0x10] sm:$0xff pattern:$0x73625140]
    %v497 = vld.sshfl [vmem:[#allocation1 + $0x18] sm:$0xff pattern:$0x73625140]
    %499 = vrot.lane.b32.xlu0 %v491, 126
    %v500 = vpop.permute.xlu0 %499
    %501 = vrot.lane.b32.xlu0 %v493, 126
    %v502 = vpop.permute.xlu0 %501
    %503 = vrot.lane.b32.xlu0 %v495, 126
    %v504 = vpop.permute.xlu0 %503
    %505 = vrot.lane.b32.xlu0 %v497, 126
    %v506 = vpop.permute.xlu0 %505
    %v507 = vsel %vm106, %v500, %v502
    %v508 = vsel %vm106, %v502, %v504
    %v509 = vsel %vm106, %v504, %v506
    %s510 = scalar_lea.vmem [#allocation1], 3
    %511 = vst [vmem:[%s510] ss:$4 sm:$0xff] %v461
    %v512 = vld.sshfl [vmem:[#allocation1] sm:$0xff pattern:$0x73625140]
    %v514 = vld.sshfl [vmem:[#allocation1 + $0x8] sm:$0xff pattern:$0x73625140]
    %v516 = vld.sshfl [vmem:[#allocation1 + $0x10] sm:$0xff pattern:$0x73625140]
    %v518 = vld.sshfl [vmem:[#allocation1 + $0x18] sm:$0xff pattern:$0x73625140]
    %520 = vrot.lane.b32.xlu0 %v512, 110
    %v521 = vpop.permute.xlu0 %520
    %522 = vrot.lane.b32.xlu0 %v514, 110
    %v523 = vpop.permute.xlu0 %522
    %524 = vrot.lane.b32.xlu0 %v516, 110
    %v525 = vpop.permute.xlu0 %524
    %526 = vrot.lane.b32.xlu0 %v518, 110
    %v527 = vpop.permute.xlu0 %526
    %v528 = vsel %vm128, %v521, %v523
    %v529 = vsel %vm128, %v523, %v525
    %v530 = vsel %vm128, %v525, %v527
    %531 = vst [vmem:[#allocation1] ss:$4 sm:$0xff] %v461
    %v532 = vld.sshfl [vmem:[#allocation1] sm:$0xff pattern:$0x73625140]
    %v534 = vld.sshfl [vmem:[#allocation1 + $0x8] sm:$0xff pattern:$0x73625140]
    %v536 = vld.sshfl [vmem:[#allocation1 + $0x10] sm:$0xff pattern:$0x73625140]
    %v538 = vld.sshfl [vmem:[#allocation1 + $0x18] sm:$0xff pattern:$0x73625140]
    %540 = vrot.lane.b32.xlu0 %v532, 109
    %v541 = vpop.permute.xlu0 %540
    %542 = vrot.lane.b32.xlu0 %v534, 109
    %v543 = vpop.permute.xlu0 %542
    %544 = vrot.lane.b32.xlu0 %v536, 109
    %v545 = vpop.permute.xlu0 %544
    %546 = vrot.lane.b32.xlu0 %v538, 109
    %v547 = vpop.permute.xlu0 %546
    %v548 = vsel %vm149, %v541, %v543
    %v549 = vsel %vm149, %v543, %v545
    %v550 = vsel %vm149, %v545, %v547
    %s551 = scalar_lea.vmem [#allocation1], 1
    %552 = vst [vmem:[%s551] ss:$4 sm:$0xff] %v461
    %v553 = vld.sshfl [vmem:[#allocation1] sm:$0xff pattern:$0x73625140]
    %v555 = vld.sshfl [vmem:[#allocation1 + $0x8] sm:$0xff pattern:$0x73625140]
    %v557 = vld.sshfl [vmem:[#allocation1 + $0x10] sm:$0xff pattern:$0x73625140]
    %v559 = vld.sshfl [vmem:[#allocation1 + $0x18] sm:$0xff pattern:$0x73625140]
    %561 = vrot.lane.b32.xlu0 %v553, 108
    %v562 = vpop.permute.xlu0 %561
    %563 = vrot.lane.b32.xlu0 %v555, 108
    %v564 = vpop.permute.xlu0 %563
    %565 = vrot.lane.b32.xlu0 %v557, 108
    %v566 = vpop.permute.xlu0 %565
    %567 = vrot.lane.b32.xlu0 %v559, 108
    %v568 = vpop.permute.xlu0 %567
    %v569 = vsel %vm171, %v562, %v564
    %v570 = vsel %vm171, %v564, %v566
    %v571 = vsel %vm171, %v566, %v568
    %s572 = scalar_lea.vmem [#allocation1], 2
    %573 = vst [vmem:[%s572] ss:$4 sm:$0xff] %v461
    %v574 = vld.sshfl [vmem:[#allocation1] sm:$0xff pattern:$0x73625140]
    %v576 = vld.sshfl [vmem:[#allocation1 + $0x8] sm:$0xff pattern:$0x73625140]
    %v578 = vld.sshfl [vmem:[#allocation1 + $0x10] sm:$0xff pattern:$0x73625140]
    %v580 = vld.sshfl [vmem:[#allocation1 + $0x18] sm:$0xff pattern:$0x73625140]
    %582 = vrot.lane.b32.xlu0 %v574, 92
    %v583 = vpop.permute.xlu0 %582
    %584 = vrot.lane.b32.xlu0 %v576, 92
    %v585 = vpop.permute.xlu0 %584
    %586 = vrot.lane.b32.xlu0 %v578, 92
    %v587 = vpop.permute.xlu0 %586
    %588 = vrot.lane.b32.xlu0 %v580, 92
    %v589 = vpop.permute.xlu0 %588
    %v590 = vsel %vm193, %v583, %v585
    %v591 = vsel %vm193, %v585, %v587
    %v592 = vsel %vm193, %v587, %v589
    %s593 = scalar_lea.vmem [#allocation1], 3
    %594 = vst [vmem:[%s593] ss:$4 sm:$0xff] %v461
    %v595 = vld.sshfl [vmem:[#allocation1] sm:$0xff pattern:$0x73625140]
    %v597 = vld.sshfl [vmem:[#allocation1 + $0x8] sm:$0xff pattern:$0x73625140]
    %v599 = vld.sshfl [vmem:[#allocation1 + $0x10] sm:$0xff pattern:$0x73625140]
    %v601 = vld.sshfl [vmem:[#allocation1 + $0x18] sm:$0xff pattern:$0x73625140]
    %603 = vrot.lane.b32.xlu0 %v595, 91
    %v604 = vpop.permute.xlu0 %603
    %605 = vrot.lane.b32.xlu0 %v597, 91
    %v606 = vpop.permute.xlu0 %605
    %607 = vrot.lane.b32.xlu0 %v599, 91
    %v608 = vpop.permute.xlu0 %607
    %609 = vrot.lane.b32.xlu0 %v601, 91
    %v610 = vpop.permute.xlu0 %609
    %v611 = vsel %vm215, %v604, %v606
    %v612 = vsel %vm215, %v606, %v608
    %v613 = vsel %vm215, %v608, %v610
    %614 = vst [vmem:[#allocation1] ss:$4 sm:$0xff] %v461
    %v615 = vld.sshfl [vmem:[#allocation1] sm:$0xff pattern:$0x73625140]
    %v617 = vld.sshfl [vmem:[#allocation1 + $0x8] sm:$0xff pattern:$0x73625140]
    %v619 = vld.sshfl [vmem:[#allocation1 + $0x10] sm:$0xff pattern:$0x73625140]
    %v621 = vld.sshfl [vmem:[#allocation1 + $0x18] sm:$0xff pattern:$0x73625140]
    %623 = vrot.lane.b32.xlu0 %v615, 90
    %v624 = vpop.permute.xlu0 %623
    %625 = vrot.lane.b32.xlu0 %v617, 90
    %v626 = vpop.permute.xlu0 %625
    %627 = vrot.lane.b32.xlu0 %v619, 90
    %v628 = vpop.permute.xlu0 %627
    %629 = vrot.lane.b32.xlu0 %v621, 90
    %v630 = vpop.permute.xlu0 %629
    %v631 = vsel %vm236, %v624, %v626
    %v632 = vsel %vm236, %v626, %v628
    %v633 = vsel %vm236, %v628, %v630
    %v635 = vsel %vm240, %v464, %v486
    %v637 = vsel %vm240, %v465, %v487
    %v639 = vsel %vm240, %v466, %v488
    %v641 = vsel %vm247, %v635, %v507
    %v643 = vsel %vm247, %v637, %v508
    %v645 = vsel %vm247, %v639, %v509
    %v647 = vsel %vm254, %v641, %v528
    %v650 = vsel %vm254, %v643, %v529
    %v653 = vsel %vm254, %v645, %v530
    %v657 = vsel %vm240, %v548, %v569
    %v660 = vsel %vm240, %v549, %v570
    %v663 = vsel %vm240, %v550, %v571
    %v665 = vsel %vm247, %v657, %v590
    %v667 = vsel %vm247, %v660, %v591
    %v669 = vsel %vm247, %v663, %v592
    %v671 = vsel %vm254, %v665, %v611
    %v674 = vsel %vm254, %v667, %v612
    %v677 = vsel %vm254, %v669, %v613
    %v680 = vsel %vm240, %v631, 0
    %v683 = vsel %vm240, %v632, 0
    %v686 = vsel %vm240, %v633, 0
    %688 = vmatpush.bf16.msra.mxu0 0
    %689 = vmatpush.bf16.msra.mxu0 0
    %690 = vmatpush.bf16.msra.mxu0 0
    %691 = vmatpush.bf16.msra.mxu0 0
    %692 = vmatpush.bf16.msra.mxu0 0
    %693 = vmatpush.bf16.msra.mxu0 %v680
    %694 = vmatpush.bf16.msra.mxu0 %v671
    %695 = vmatpush.bf16.msra.mxu0 %v647
    %696 = vmatmul.bf16.gmra.mxu0 %v290
    %v697 = vpop.f32.mrf.mxu0
    %v698 = vadd.f32 0.0, %v697
    %v699 = vpop.f32.mrf.mxu0
    %700 = vdwg.mxu0
    %701 = vmatpush.bf16.msra.mxu0 0
    %702 = vmatpush.bf16.msra.mxu0 0
    %703 = vmatpush.bf16.msra.mxu0 0
    %704 = vmatpush.bf16.msra.mxu0 0
    %705 = vmatpush.bf16.msra.mxu0 0
    %706 = vmatpush.bf16.msra.mxu0 %v683
    %707 = vmatpush.bf16.msra.mxu0 %v674
    %708 = vmatpush.bf16.msra.mxu0 %v650
    %709 = vmatmul.bf16.gmra.mxu0 %v290
    %v710 = vpop.f32.mrf.mxu0
    %v711 = vadd.f32 0.0, %v710
    %v712 = vpop.f32.mrf.mxu0
    %713 = vdwg.mxu0
    %714 = vmatpush.bf16.msra.mxu0 0
    %715 = vmatpush.bf16.msra.mxu0 0
    %716 = vmatpush.bf16.msra.mxu0 0
    %717 = vmatpush.bf16.msra.mxu0 0
    %718 = vmatpush.bf16.msra.mxu0 0
    %719 = vmatpush.bf16.msra.mxu0 %v686
    %720 = vmatpush.bf16.msra.mxu0 %v677
    %721 = vmatpush.bf16.msra.mxu0 %v653
    %722 = vmatmul.bf16.gmra.mxu0 %v290
    %v723 = vpop.f32.mrf.mxu0
    %v724 = vadd.f32 0.0, %v723
    %v725 = vpop.f32.mrf.mxu0
    %726 = vdwg.mxu0
    %v727 = vmul.f32 %v698, %v341
    %v728 = vmul.f32 %v711, %v342
    %v729 = vmul.f32 %v724, %v343
    %v730 = vadd.f32 %v727, %v728
    %v731 = vadd.f32 %v730, %v729
    %732 = vadd.xlane.f32.xlu0 %v731
    %v733 = vpop.xlane.xlu0 %732
    %v734 = vmul.f32 %v727, %v698
    %v735 = vmul.f32 %v728, %v711
    %v736 = vmul.f32 %v729, %v724
    %v737 = vadd.f32 %v734, %v735
    %v738 = vadd.f32 %v737, %v736
    %739 = vadd.xlane.f32.xlu0 %v738
    %v740 = vpop.xlane.xlu0 %739
    %741 = vmatpush.msra.mxu0 0.0
    %742 = vmatpush.msra.mxu0 0.0
    %743 = vmatpush.msra.mxu0 0.0
    %744 = vmatpush.msra.mxu0 0.0
    %745 = vmatpush.msra.mxu0 0.0
    %746 = vmatpush.msra.mxu0 0.0
    %747 = vmatpush.msra.mxu0 0.0
    %748 = vmatpush.msra.mxu0 0.0
    %749 = vmatpush.msra.mxu0 0.0
    %750 = vmatpush.msra.mxu0 0.0
    %751 = vmatpush.msra.mxu0 0.0
    %752 = vmatpush.msra.mxu0 0.0
    %753 = vmatpush.msra.mxu0 0.0
    %754 = vmatpush.msra.mxu0 0.0
    %755 = vmatpush.msra.mxu0 0.0
    %756 = vmatpush.msra.mxu0 %v733
    %757 = vmatmul.f32.gmra.mxu0 %v363
    %v758 = vpop.f32.mrf.mxu0
    %v759 = vadd.f32 0.0, %v758
    %760 = vdwg.mxu0
    %761 = vmatpush.msra.mxu0 0.0
    %762 = vmatpush.msra.mxu0 0.0
    %763 = vmatpush.msra.mxu0 0.0
    %764 = vmatpush.msra.mxu0 0.0
    %765 = vmatpush.msra.mxu0 0.0
    %766 = vmatpush.msra.mxu0 0.0
    %767 = vmatpush.msra.mxu0 0.0
    %768 = vmatpush.msra.mxu0 0.0
    %769 = vmatpush.msra.mxu0 0.0
    %770 = vmatpush.msra.mxu0 0.0
    %771 = vmatpush.msra.mxu0 0.0
    %772 = vmatpush.msra.mxu0 0.0
    %773 = vmatpush.msra.mxu0 0.0
    %774 = vmatpush.msra.mxu0 0.0
    %775 = vmatpush.msra.mxu0 0.0
    %776 = vmatpush.msra.mxu0 %v740
    %777 = vmatmul.f32.gmra.mxu0 %v363
    %v778 = vpop.f32.mrf.mxu0
    %v779 = vadd.f32 0.0, %v778
    %780 = vdwg.mxu0
    %v781 = vmul.f32 %v759, %v759
    %v782 = vsub.f32 %v779, %v781
    %v783 = vmax.f32 %v782, 0.0
    %v784 = vadd.f32 %v783, 1e-05
    %v785 = vrsqrt.pop %v784
    %v786 = vmul.f32 %v785, %v784
    %v787 = vmul.f32 %v786, %v785
    %v788 = vmul.f32 0.5, %v787
    %v789 = vsub.f32 1.5, %v788
    %v790 = vmul.f32 %v785, %v789
    %vm791 = vweird.f32 %v784
    %vm792 = vweird.f32 %v785
    %vm793 = vmor %vm791, %vm792
    %v794 = vsel %vm793, %v785, %v790
    %v795 = vmul.f32 %v55, %v794
    %v796 = vmul.f32 %v759, %v795
    %v797 = vsub.f32 %v56, %v796
    %799 = vset.pattern.permute.xlu0 0
    %800 = vperm.xlu0 %799, %v795
    %v801 = vpop.permute.xlu0 %800
    %v803 = vmul.f32 %v698, %v801
    %v804 = vmul.f32 %v711, %v801
    %v805 = vmul.f32 %v724, %v801
    %807 = vset.pattern.permute.xlu0 0
    %808 = vperm.xlu0 %807, %v797
    %v809 = vpop.permute.xlu0 %808
    %v811 = vadd.f32 %v803, %v809
    %v812 = vadd.f32 %v804, %v809
    %v813 = vadd.f32 %v805, %v809
    %vm814 = vcmp.gt.f32.partialorder %v811, 0.0
    %vm815 = vcmp.gt.f32.partialorder %v812, 0.0
    %vm816 = vcmp.gt.f32.partialorder %v813, 0.0
    %v817 = vmin.f32 %v811, 0.0
    %v818 = vmin.f32 %v812, 0.0
    %v819 = vmin.f32 %v813, 0.0
    %v820 = vmul.f32 %v817, 1.442695
    %v821 = vpow.pop %v820
    %v822 = vmul.f32 %v818, 1.442695
    %v823 = vpow.pop %v822
    %v824 = vmul.f32 %v819, 1.442695
    %v825 = vpow.pop %v824
    %v826 = vsub.f32 %v821, 1.0
    %v827 = vsub.f32 %v823, 1.0
    %v828 = vsub.f32 %v825, 1.0
    %v829 = vsel %vm814, %v811, %v826
    %v830 = vsel %vm815, %v812, %v827
    %v831 = vsel %vm816, %v813, %v828
    %s832 = scalar_lea.vmem [#allocation7], 24
    %833 = vst [vmem:[%s832] sm:$0xff] %v829
    %834 = vst [vmem:[%s832 + $0x8] sm:$0xff] %v830
    %835 = vst [vmem:[%s832 + $0x10] sm:$0xff] %v831
    // Predicated region
    $region34: #{tpu_custom_call.1} parent=1 // pred_check
      _
    $region35: #{tpu_custom_call.1} parent=1 // pred_check_branch
      %837 = sbr.rel (0) target = $region37
    $region36: #{tpu_custom_call.1} parent=1 // pred_region
      %839 = vsyncadd [#allocation4], 0
      %s840 = sshll.u32 [#allocation7], 4
      %s841 = int_to_ptr.vmem [resolvable:$true] %s840
      %s842 = sshll.u32 %s6, 4
      %s843 = int_to_ptr.hbm [resolvable:$true] %s842
      %848 = dma.vmem_to_hbm [thread:$0]  %s841, 768, %s843, [#allocation4], 384, 384, 24
    $region37: #{tpu_custom_call.1} parent=1 // pred_fallthru
      _
    // Predicated region
    $region38: #{tpu_custom_call.1} parent=1 // pred_check
      _
    $region39: #{tpu_custom_call.1} parent=1 // pred_check_branch
      %850 = sbr.rel (0) target = $region41
    $region40: #{tpu_custom_call.1} parent=1 // pred_region
      %852 = dma.done [#allocation4], 768
    $region41: #{tpu_custom_call.1} parent=1 // pred_fallthru
      _
    %853 = vsyncpa [#allocation3], 1
    %854 = vsyncpa [#allocation6], 1
    %855 = vsyncpa [#allocation4], 1

</llo_original>
